<compile_context>
chip_gen: v7x
topology: tpu7x:2x2x1
jax: 0.10.0
libtpu: 0.0.40
codegen_flags: <defaults>
</compile_context>

<pallas_src>
import functools

import jax
import jax.numpy as jnp
from jax.experimental import pallas as pl
from jax.experimental.pallas import tpu as pltpu


def _round_up(x, m):
    return ((x + m - 1) // m) * m


def _choose_token_tile(B, N, *, max_tn=512, target_steps=8):
    """Token-tile width.

    Aim for ~target_steps grid steps total (pipelining + v7x dual-TC split),
    use multiples of 128 when N is tiled, fall back to a full-extent block
    (exempt from the 128-multiple rule) when one block covers N anyway.
    max_tn keeps the double-buffered x block small enough for v7x VMEM.
    """
    steps_per_batch = max(1, -(-target_steps // max(B, 1)))
    tn = _round_up(-(-N // steps_per_batch), 128)
    tn = min(tn, max_tn)
    if tn >= N:
        return N
    return tn


def _decoder_head_kernel(x_ref, w_ref, b_ref, o_ref, *, n_cls):
    # x_ref: (TN, D)      bf16  token tile (features on lanes)
    # w_ref: (C_pad, D)   bf16  PyTorch layout, classes zero-padded to mult-of-16,
    #                           VMEM-resident (constant index map)
    # b_ref: (C_pad, 1)   f32   zero-padded
    # o_ref: (n_cls, TN)  f32   classes on sublanes, tokens on lanes
    #
    # out[c, n] = sum_d w[c, d] * x[n, d]  ==  W @ X^T  (MXU "nt" matmul).
    # TODO(synk): the "nt" contraction implies an XLU transpose of the x tile;
    # it is hidden under HBM DMA here (kernel is bandwidth-bound) -- only act
    # if a bundle dump shows it on the critical path.
    acc = jax.lax.dot_general(
        w_ref[...], x_ref[...],
        dimension_numbers=(((1,), (1,)), ((), ())),
        preferred_element_type=jnp.float32)              # (C_pad, TN) f32
    acc = acc + b_ref[...]                               # (C_pad, 1) broadcasts
    o_ref[...] = acc[:n_cls].astype(o_ref.dtype)         # write only real classes


def decoder_head_pallas(x, w, b, *, n_cls, max_tn=512, target_steps=8):
    """x: (B, N, D) bf16, w: (C_pad, D) bf16, b: (C_pad, 1) f32 -> (B, n_cls, N) f32."""
    B, N, D = x.shape
    C_pad = w.shape[0]

    TN = _choose_token_tile(B, N, max_tn=max_tn, target_steps=target_steps)
    grid = (B, pl.cdiv(N, TN))

    cost = pl.CostEstimate(
        flops=2 * B * N * D * C_pad,
        transcendentals=0,
        bytes_accessed=(B * N * D * x.dtype.itemsize      # token reads (bf16)
                        + C_pad * D * w.dtype.itemsize    # resident weight
                        + C_pad * 4                       # bias
                        + B * n_cls * N * 4),             # f32 logits write
    )

    kernel = functools.partial(_decoder_head_kernel, n_cls=n_cls)

    return pl.pallas_call(
        kernel,
        out_shape=jax.ShapeDtypeStruct((B, n_cls, N), jnp.float32),
        grid_spec=pltpu.PrefetchScalarGridSpec(
            num_scalar_prefetch=0,
            grid=grid,
            in_specs=[
                # token tile of x: batch dim squeezed, kernel sees (TN, D)
                pl.BlockSpec((None, TN, D), lambda bi, ni: (bi, ni, 0)),
                # weight & bias: constant block index -> DMA'd once, VMEM-resident
                pl.BlockSpec((C_pad, D), lambda bi, ni: (0, 0)),
                pl.BlockSpec((C_pad, 1), lambda bi, ni: (0, 0)),
            ],
            # transposed (n_cls, TN) output block: class dim is the full array
            # extent (exempt from the (8,128) rule), tokens lane-dense.
            out_specs=pl.BlockSpec((None, n_cls, TN), lambda bi, ni: (bi, 0, ni)),
        ),
        compiler_params=pltpu.CompilerParams(
            dimension_semantics=("parallel", "parallel")),
        cost_estimate=cost,
    )(x, w, b)


@functools.partial(jax.jit, static_argnames=("n_cls", "gs"))
def _decoder_linear_forward(x, w, b, *, n_cls, gs):
    B, N, D = x.shape
    # bf16 inputs halve the HBM read traffic; f32 accumulation inside the kernel.
    y = decoder_head_pallas(x.astype(jnp.bfloat16), w, b, n_cls=n_cls)  # (B, n_cls, N) f32
    # 'b (h w) c -> b c h w' is a free contiguous reshape (transpose was fused
    # into the kernel's output layout, and no class-padding slice remains).
    return y.reshape(B, n_cls, gs, N // gs)


class DecoderLinearPallas:
    """JAX/Pallas port of DecoderLinear."""

    def __init__(self, n_cls, patch_size, d_encoder, key):
        self.n_cls = n_cls
        self.patch_size = patch_size
        self.d_encoder = d_encoder
        # Pad classes only for the weight/bias (bf16 sublane packing); the
        # kernel output is exactly n_cls rows.
        self.c_pad = _round_up(n_cls, 16)

        # init_weights: trunc_normal_(weight, std=0.02), bias = 0.
        # PyTorch layout (n_cls, d_encoder), padded rows zeroed so the padded
        # accumulator rows never leak into the n_cls output rows.
        w = 0.02 * jax.random.truncated_normal(
            key, -2.0, 2.0, (n_cls, d_encoder), dtype=jnp.float32)
        w_pad = jnp.zeros((self.c_pad, d_encoder), jnp.float32).at[:n_cls].set(w)
        self.w = w_pad.astype(jnp.bfloat16)                  # (C_pad, D)
        self.b = jnp.zeros((self.c_pad, 1), dtype=jnp.float32)

    def __call__(self, x, im_size):
        # x: (B, N, d_encoder); im_size = (H, W)
        H, W = im_size
        GS = H // self.patch_size
        return _decoder_linear_forward(x, self.w, self.b,
                                       n_cls=self.n_cls, gs=GS)


if __name__ == "__main__":
    key = jax.random.PRNGKey(0)
    k_param, k_x = jax.random.split(key)

    # Small, module-consistent shapes:
    B = 2
    H = W = 16
    patch_size = 4
    d_encoder = 32
    n_cls = 8
    GS = H // patch_size                 # 4
    N = GS * (W // patch_size)           # 16 tokens

    model = DecoderLinearPallas(n_cls, patch_size, d_encoder, k_param)
    x = jax.random.normal(k_x, (B, N, d_encoder), dtype=jnp.float32)

    out = model(x, (H, W))
    out = jax.block_until_ready(out)

    # Reference check in plain JAX (f32 math; kernel uses bf16 inputs so use a
    # correspondingly loose tolerance).
    w_ref = model.w[:n_cls].astype(jnp.float32)               # (n_cls, D)
    ref = jnp.einsum("bnd,cd->bnc", x, w_ref)                 # bias is zero
    ref = jnp.transpose(ref.reshape(B, GS, N // GS, n_cls), (0, 3, 1, 2))

    assert out.shape == (B, n_cls, GS, W // patch_size), out.shape
    assert out.dtype == jnp.float32, out.dtype
    assert jnp.allclose(out, ref, atol=2e-2, rtol=2e-2), \
        float(jnp.max(jnp.abs(out - ref)))

    print("KERNEL_OK")
</pallas_src>

<mosaic_0001>
module attributes {stable_mosaic.version = 11 : i64} {
  func.func @_decoder_head_kernel(%arg0: i32, %arg1: i32, %arg2: memref<1x16x32xbf16, #tpu.memory_space<vmem>>, %arg3: memref<16x32xbf16, #tpu.memory_space<vmem>>, %arg4: memref<16x1xf32, #tpu.memory_space<vmem>>, %arg5: memref<1x8x16xf32, #tpu.memory_space<vmem>>) attributes {dimension_semantics = [#tpu.dimension_semantics<parallel>, #tpu.dimension_semantics<parallel>], iteration_bounds = array<i64: 2, 1>, scalar_prefetch = 0 : i64, scratch_operands = 0 : i64, tpu.core_type = #tpu.core_type<tc>, window_params = [{transform_indices = @transform_0, window_bounds = array<i64: 1, 16, 32>}, {pipeline_mode = #tpu.pipeline_mode<synchronous>, transform_indices = @transform_1, window_bounds = array<i64: 16, 32>}, {pipeline_mode = #tpu.pipeline_mode<synchronous>, transform_indices = @transform_2, window_bounds = array<i64: 16, 1>}, {transform_indices = @transform_3, window_bounds = array<i64: 1, 8, 16>}]} {
    %c0 = arith.constant 0 : index
    %c0_0 = arith.constant 0 : index
    %0 = vector.load %arg3[%c0, %c0_0] : memref<16x32xbf16, #tpu.memory_space<vmem>>, vector<16x32xbf16>
    %c0_1 = arith.constant 0 : index
    %c0_2 = arith.constant 0 : index
    %c0_3 = arith.constant 0 : index
    %1 = vector.load %arg2[%c0_1, %c0_2, %c0_3] : memref<1x16x32xbf16, #tpu.memory_space<vmem>>, vector<1x16x32xbf16>
    %2 = vector.shape_cast %1 : vector<1x16x32xbf16> to vector<16x32xbf16>
    %cst = arith.constant dense<0.000000e+00> : vector<16x16xf32>
    %3 = tpu.matmul %0, %2, %cst {dimension_numbers = #tpu.dot_dimension_numbers<[1], [1], [0], [0], [0, 0, 1, 0], [], []>} : vector<16x32xbf16>, vector<16x32xbf16>, vector<16x16xf32> -> vector<16x16xf32>
    %c0_4 = arith.constant 0 : index
    %c0_5 = arith.constant 0 : index
    %4 = vector.load %arg4[%c0_4, %c0_5] : memref<16x1xf32, #tpu.memory_space<vmem>>, vector<16x1xf32>
    %5 = vector.broadcast %4 : vector<16x1xf32> to vector<16x16xf32>
    %6 = arith.addf %3, %5 : vector<16x16xf32>
    %7 = vector.extract_strided_slice %6 {offsets = [0, 0], sizes = [8, 16], strides = [1, 1]} : vector<16x16xf32> to vector<8x16xf32>
    %c0_6 = arith.constant 0 : index
    %c0_7 = arith.constant 0 : index
    %c0_8 = arith.constant 0 : index
    %8 = vector.load %arg5[%c0_6, %c0_7, %c0_8] : memref<1x8x16xf32, #tpu.memory_space<vmem>>, vector<1x8x16xf32>
    %9 = vector.shape_cast %8 : vector<1x8x16xf32> to vector<8x16xf32>
    %10 = vector.shape_cast %7 : vector<8x16xf32> to vector<1x8x16xf32>
    tpu.vector_store %arg5[%c0_6, %c0_7, %c0_8], %10 {strides = array<i32>} : memref<1x8x16xf32, #tpu.memory_space<vmem>>, vector<1x8x16xf32>,
    return
  }
  func.func @transform_0(%arg0: i32, %arg1: i32) -> (i32, i32, i32) {
    %c0_i32 = arith.constant 0 : i32
    %c0_i32_0 = arith.constant 0 : i32
    return %arg0, %arg1, %c0_i32 : i32, i32, i32
  }
  func.func @transform_1(%arg0: i32, %arg1: i32) -> (i32, i32) {
    %c0_i32 = arith.constant 0 : i32
    %c0_i32_0 = arith.constant 0 : i32
    %c0_i32_1 = arith.constant 0 : i32
    return %c0_i32, %c0_i32_0 : i32, i32
  }
  func.func @transform_2(%arg0: i32, %arg1: i32) -> (i32, i32) {
    %c0_i32 = arith.constant 0 : i32
    %c0_i32_0 = arith.constant 0 : i32
    %c0_i32_1 = arith.constant 0 : i32
    return %c0_i32, %c0_i32_0 : i32, i32
  }
  func.func @transform_3(%arg0: i32, %arg1: i32) -> (i32, i32, i32) {
    %c0_i32 = arith.constant 0 : i32
    %c0_i32_0 = arith.constant 0 : i32
    return %arg0, %c0_i32, %arg1 : i32, i32, i32
  }
}

</mosaic_0001>

<llo_original>
// kernel: _decoder_linear_forward.1
$region0: #{_decoder_linear_forward.1}
  #allocation0 [shape = 'u32[]', space=smem, size = 0x4, offset = 0x4, fixed_abs, tag = 'smem constant byte address 0x4 - core index']
  #allocation1 [shape = 'u32[144,128]{1,0:T(1,128)}', space=vmem, size = 0x12000, scoped, tag = 'internal scratch']
  %s0 = inlined_call_operand.vmem [shape: bf16[2,16,32], index: 0, kind: input, shape index: {}]
  %s1 = inlined_call_operand.vmem [shape: bf16[16,32], index: 1, kind: input, shape index: {}]
  %s2 = inlined_call_operand.vmem [shape: f32[16,1], index: 2, kind: input, shape index: {}]
  %s3 = inlined_call_operand.vmem [shape: f32[2,8,16], index: 3, kind: output, shape index: {}]
  %s4 = sld [smem:[#allocation0]]
  $region45: #{_decoder_linear_forward.1} parent=0
    _
  %s6 = ssub.s32 1, %s4
  %s7 = scalar_select 0, %s6, %s4
  loop: start=0, step=1, limit=4
  $region2: #{_decoder_linear_forward.1} parent=0 // loop_pre_header
    _
  $region3: #{_decoder_linear_forward.1} parent=0 // loop_header
    %s9 = sphi 0, %s13
    %p10 = scmp.ge.s32.totalorder %s9, 4
    %s16 = sphi 0, %s28
    %s17 = sphi 0, %s24
    %s18 = sphi 0, %s16
    %s19 = sphi 0, %s17
    %s20 = sphi 0, %s18
    %s21 = sphi 0, %s19
    %s33 = sphi 0, %s35
    %s36 = sphi 0, %s33
    %s37 = sphi 0, %s36
    %s53 = sphi 0, %s37
    %s57 = sphi 0, %s57
    %s59 = sphi 0, %s57
    %s60 = sphi 0, %s59
    %s74 = sphi 0, %s60
    %s78 = sphi 0, %s78
    %s80 = sphi 0, %s78
    %s81 = sphi 0, %s80
    %s95 = sphi 0, %s81
    %s103 = sphi 0, %s105
    %s106 = sphi 0, %s103
    %s107 = sphi 0, %s106
    %s123 = sphi 0, %s107
  $region4: #{_decoder_linear_forward.1} parent=0 // loop_header_branch
    %12 = sbr.rel (%p10) target = $region8
  $region5: #{_decoder_linear_forward.1} parent=0 // loop_body
    %s14 = ssub.s32 %s9, 1
    %s15 = ssub.s32 %s9, 2
    %s22 = sadd.s32 1, %s17
    %p23 = scmp.ge.s32.totalorder %s22, 1
    %s24 = scalar_select %p23, 0, %s22
    %s25 = sadd.s32 1, %s16
    %s26 = scalar_select %p23, %s25, %s16
    %p27 = scmp.ge.s32.totalorder %s26, 2
    %s28 = scalar_select %p27, 0, %s26
    %s29 = ssub.s32 %s16, %s28
    %s30 = ssub.s32 %s17, %s24
    %s31 = sor.u32 %s29, %s30
    %p32 = scmp.eq.s32.totalorder %s31, 0
    %s34 = sadd.s32 %s33, 1
    %s35 = scalar_select %p32, %s33, %s34
    %p38 = pneg %p32
    %p39 = scmp.eq.s32.totalorder %s9, 1
    %p40 = por %p38, %p39
    %p41 = scmp.ne.s32.totalorder %s33, %s36
    %p42 = scmp.eq.s32.totalorder %s9, 0
    %p43 = por %p41, %p42
    %p44 = scmp.ne.s32.totalorder %s33, %s36
    %p45 = scmp.eq.s32.totalorder %s14, 1
    %p46 = por %p44, %p45
    %p47 = scmp.ne.s32.totalorder %s36, %s37
    %p48 = scmp.eq.s32.totalorder %s14, 0
    %p49 = por %p47, %p48
    %p50 = scmp.ne.s32.totalorder %s36, %s37
    %p51 = scmp.eq.s32.totalorder %s15, 1
    %p52 = por %p50, %p51
    %p54 = scmp.ne.s32.totalorder %s37, %s53
    %p55 = scmp.eq.s32.totalorder %s15, 0
    %p56 = por %p54, %p55
    %s58 = sadd.s32 %s57, 1
    %p61 = scmp.eq.s32.totalorder %s9, 1
    %p62 = scmp.ne.s32.totalorder %s57, %s59
    %p63 = scmp.eq.s32.totalorder %s9, 0
    %p64 = por %p62, %p63
    %p65 = scmp.ne.s32.totalorder %s57, %s59
    %p66 = scmp.eq.s32.totalorder %s14, 1
    %p67 = por %p65, %p66
    %p68 = scmp.ne.s32.totalorder %s59, %s60
    %p69 = scmp.eq.s32.totalorder %s14, 0
    %p70 = por %p68, %p69
    %p71 = scmp.ne.s32.totalorder %s59, %s60
    %p72 = scmp.eq.s32.totalorder %s15, 1
    %p73 = por %p71, %p72
    %p75 = scmp.ne.s32.totalorder %s60, %s74
    %p76 = scmp.eq.s32.totalorder %s15, 0
    %p77 = por %p75, %p76
    %s79 = sadd.s32 %s78, 1
    %p82 = scmp.eq.s32.totalorder %s9, 1
    %p83 = scmp.ne.s32.totalorder %s78, %s80
    %p84 = scmp.eq.s32.totalorder %s9, 0
    %p85 = por %p83, %p84
    %p86 = scmp.ne.s32.totalorder %s78, %s80
    %p87 = scmp.eq.s32.totalorder %s14, 1
    %p88 = por %p86, %p87
    %p89 = scmp.ne.s32.totalorder %s80, %s81
    %p90 = scmp.eq.s32.totalorder %s14, 0
    %p91 = por %p89, %p90
    %p92 = scmp.ne.s32.totalorder %s80, %s81
    %p93 = scmp.eq.s32.totalorder %s15, 1
    %p94 = por %p92, %p93
    %p96 = scmp.ne.s32.totalorder %s81, %s95
    %p97 = scmp.eq.s32.totalorder %s15, 0
    %p98 = por %p96, %p97
    %s99 = ssub.s32 %s16, %s28
    %s100 = ssub.s32 %s17, %s24
    %s101 = sor.u32 %s99, %s100
    %p102 = scmp.eq.s32.totalorder %s101, 0
    %s104 = sadd.s32 %s103, 1
    %s105 = scalar_select %p102, %s103, %s104
    %p108 = pneg %p102
    %p109 = scmp.eq.s32.totalorder %s9, 1
    %p110 = por %p108, %p109
    %p111 = scmp.ne.s32.totalorder %s103, %s106
    %p112 = scmp.eq.s32.totalorder %s9, 0
    %p113 = por %p111, %p112
    %p114 = scmp.ne.s32.totalorder %s103, %s106
    %p115 = scmp.eq.s32.totalorder %s14, 1
    %p116 = por %p114, %p115
    %p117 = scmp.ne.s32.totalorder %s106, %s107
    %p118 = scmp.eq.s32.totalorder %s14, 0
    %p119 = por %p117, %p118
    %p120 = scmp.ne.s32.totalorder %s106, %s107
    %p121 = scmp.eq.s32.totalorder %s15, 1
    %p122 = por %p120, %p121
    %p124 = scmp.ne.s32.totalorder %s107, %s123
    %p125 = scmp.eq.s32.totalorder %s15, 0
    %p126 = por %p124, %p125
    %p127 = scmp.le.s32.totalorder 1, %s9
    %p128 = scmp.lt.s32.totalorder %s9, 3
    %p129 = pnand %p127, %p128
    %p130 = pneg %p129
    // Predicated region
    $region9: #{_decoder_linear_forward.1} parent=5 // pred_check
      _
    $region10: #{_decoder_linear_forward.1} parent=5 // pred_check_branch
      %132 = sbr.rel (%p129) target = $region12
    $region11: #{_decoder_linear_forward.1} parent=5 // pred_region
      %s133 = ssub.s32 %s9, 1
      // Predicated region
      $region13: #{_decoder_linear_forward.1} parent=11 // pred_check
        %p134 = pneg %p70
      $region14: #{_decoder_linear_forward.1} parent=11 // pred_check_branch
        %136 = sbr.rel (%p134) target = $region16
      $region15: #{_decoder_linear_forward.1} parent=11 // pred_region
        _
      $region16: #{_decoder_linear_forward.1} parent=11 // pred_fallthru
        _
      // Predicated region
      $region17: #{_decoder_linear_forward.1} parent=11 // pred_check
        %p137 = pneg %p91
      $region18: #{_decoder_linear_forward.1} parent=11 // pred_check_branch
        %139 = sbr.rel (%p137) target = $region20
      $region19: #{_decoder_linear_forward.1} parent=11 // pred_region
        _
      $region20: #{_decoder_linear_forward.1} parent=11 // pred_fallthru
        _
    $region12: #{_decoder_linear_forward.1} parent=5 // pred_fallthru
      _
    %p140 = scmp.lt.s32.totalorder %s9, 2
    // Predicated region
    $region21: #{_decoder_linear_forward.1} parent=5 // pred_check
      %p141 = pneg %p140
    $region22: #{_decoder_linear_forward.1} parent=5 // pred_check_branch
      %143 = sbr.rel (%p141) target = $region24
    $region23: #{_decoder_linear_forward.1} parent=5 // pred_region
      // Predicated region
      $region25: #{_decoder_linear_forward.1} parent=23 // pred_check
        %p144 = pneg %p43
      $region26: #{_decoder_linear_forward.1} parent=23 // pred_check_branch
        %146 = sbr.rel (%p144) target = $region28
      $region27: #{_decoder_linear_forward.1} parent=23 // pred_region
        %s147 = smul.u32 2, %s17
        %p148 = scmp.lt.s32.totalorder %s16, 1
        %s149 = scalar_select %p148, %s16, 1
        %p150 = scmp.lt.s32.totalorder %s147, 1
        %s151 = scalar_select %p150, %s147, 1
        %s152 = smul.addr %s149, 2
        %s153 = sadd.s32 %s151, %s152
        %s154 = smul.addr %s153, 4
        %s155 = scalar_lea.vmem %s0, %s154
        %s156 = smul.u32 2, %s17
      $region28: #{_decoder_linear_forward.1} parent=23 // pred_fallthru
        _
    $region24: #{_decoder_linear_forward.1} parent=5 // pred_fallthru
      _
    %p157 = scmp.le.s32.totalorder 1, %s9
    %p158 = scmp.lt.s32.totalorder %s9, 3
    %p159 = pnand %p157, %p158
    %p160 = pneg %p159
    // Predicated region
    $region29: #{_decoder_linear_forward.1} parent=5 // pred_check
      _
    $region30: #{_decoder_linear_forward.1} parent=5 // pred_check_branch
      %162 = sbr.rel (%p159) target = $region32
    $region31: #{_decoder_linear_forward.1} parent=5 // pred_region
      %s163 = ssub.s32 %s9, 1
      %s164 = smul.u32 2, %s19
      %p165 = scmp.lt.s32.totalorder %s18, 1
      %s166 = scalar_select %p165, %s18, 1
      %p167 = scmp.lt.s32.totalorder %s164, 1
      %s168 = scalar_select %p167, %s164, 1
      %s169 = smul.addr %s166, 2
      %s170 = sadd.s32 %s168, %s169
      %s171 = smul.addr %s170, 4
      %s172 = scalar_lea.vmem %s0, %s171
      %p173 = pneg %p49
      %p174 = pneg %p46
      %p175 = pneg %p70
      %p176 = pneg %p67
      %p177 = pneg %p91
      %p178 = pneg %p88
      %p179 = pneg %p119
      %p180 = pneg %p116
      %p181 = scmp.lt.s32.totalorder %s18, 1
      %s182 = scalar_select %p181, %s18, 1
      %p183 = scmp.lt.s32.totalorder %s19, 0
      %s184 = scalar_select %p183, %s19, 0
      %s185 = sadd.s32 %s184, %s182
      %s186 = smul.addr %s185, 8
      %s187 = scalar_lea.vmem %s3, %s186
      %s188 = smul.u32 2, %s19
      %p189 = scmp.lt.s32.totalorder %s18, 1
      %s190 = scalar_select %p189, %s18, 1
      %p191 = scmp.lt.s32.totalorder %s188, 1
      %s192 = scalar_select %p191, %s188, 1
      %s193 = smul.addr %s190, 2
      %s194 = sadd.s32 %s192, %s193
      %s195 = smul.addr %s194, 4
      %s196 = scalar_lea.vmem %s0, %s195
      %s197 = smul.u32 2, %s19
      %p198 = scmp.lt.s32.totalorder %s18, 1
      %s199 = scalar_select %p198, %s18, 1
      %p200 = scmp.lt.s32.totalorder %s19, 0
      %s201 = scalar_select %p200, %s19, 0
      %s202 = sadd.s32 %s201, %s199
      %s203 = smul.addr %s202, 8
      %s204 = scalar_lea.vmem %s3, %s203
      %v206 = vld [vmem:[%s1] sm:$0xf]
      %v207 = vld [vmem:[%s1 + $0x4] sm:$0xf]
      %v208 = vld [vmem:[%s196] sm:$0xf]
      %v209 = vld [vmem:[%s196 + $0x4] sm:$0xf]
      %v210 = vld [vmem:[%s2] sm:$0xff]
      %v211 = vld [vmem:[%s2 + $0x8] sm:$0xff]
      %213 = vset.pattern.permute.xlu0 0
      %214 = vperm.xlu0 %213, %v210
      %v215 = vpop.permute.xlu0 %214
      %218 = vset.pattern.permute.xlu0 0
      %219 = vperm.xlu0 %218, %v211
      %v220 = vpop.permute.xlu0 %219
      %v223 = vunpack.c.l.b16 %v206
      %v224 = vunpack.c.l.b16 %v207
      %v225 = vpack.c.b16 %v224, %v223
      %v228 = vunpack.c.l.b16 %v208
      %v229 = vunpack.c.l.b16 %v209
      %v230 = vpack.c.b16 %v229, %v228
      %vm231 = vcmask 261120
      %v233 = vsel %vm231, %v225, 0
      %v236 = vsel %vm231, %v230, 0
      %238 = vmatprep.subr.bf16.mxu0 0
      %239 = vmatpush1.bf16.xpose.msra.mxu0 %v236
      %240 = vmatprep.subr.bf16.mxu0 0
      %241 = vmatpush1.bf16.xpose.msra.mxu0 0
      %242 = vmatprep.subr.bf16.mxu0 0
      %243 = vmatpush1.bf16.xpose.msra.mxu0 0
      %244 = vmatprep.subr.bf16.mxu0 0
      %245 = vmatpush1.bf16.xpose.msra.mxu0 0
      %246 = vmatprep.subr.bf16.mxu0 0
      %247 = vmatpush1.bf16.xpose.msra.mxu0 0
      %248 = vmatprep.subr.bf16.mxu0 0
      %249 = vmatpush1.bf16.xpose.msra.mxu0 0
      %250 = vmatprep.subr.bf16.mxu0 0
      %251 = vmatpush1.bf16.xpose.msra.mxu0 0
      %252 = vmatprep.subr.bf16.mxu0 0
      %253 = vmatpush1.bf16.xpose.msra.mxu0 0
      %254 = vmatprep.subr.bf16.mxu0 0
      %255 = vmatpush1.bf16.xpose.msra.mxu0 0
      %256 = vmatprep.subr.bf16.mxu0 0
      %257 = vmatpush1.bf16.xpose.msra.mxu0 0
      %258 = vmatprep.subr.bf16.mxu0 0
      %259 = vmatpush1.bf16.xpose.msra.mxu0 0
      %260 = vmatprep.subr.bf16.mxu0 0
      %261 = vmatpush1.bf16.xpose.msra.mxu0 0
      %262 = vmatprep.subr.bf16.mxu0 0
      %263 = vmatpush1.bf16.xpose.msra.mxu0 0
      %264 = vmatprep.subr.bf16.mxu0 0
      %265 = vmatpush1.bf16.xpose.msra.mxu0 0
      %266 = vmatprep.subr.bf16.mxu0 0
      %267 = vmatpush1.bf16.xpose.msra.mxu0 0
      %268 = vmatprep.subr.bf16.mxu0 0
      %269 = vmatpush1.bf16.xpose.msra.mxu0 0
      %270 = vmatprep.mubr.bf16.mxu0 0
      %271 = vmatmul.mubr.bf16.gmra.mrb[0].mxu0 %v233
      %v272 = vpop.f32.mrb[0].mxu0
      %v273 = vadd.f32 %v215, %v272
      %v274 = vpop.f32.mrb[0].mxu0
      %v275 = vpop.f32.mrb[0].mxu0
      %v276 = vpop.f32.mrb[0].mxu0
      %277 = vdwg.mxu0
      %vm278 = vcmask 130048
      %279 = vst.msk [vmem:[%s204] sm:$0xff] %vm278, %v273
      %p280 = scmp.lt.s32.totalorder %s18, 1
      %s281 = scalar_select %p280, %s18, 1
      %p282 = scmp.lt.s32.totalorder %s19, 0
      %s283 = scalar_select %p282, %s19, 0
      %s284 = sadd.s32 %s283, %s281
      %s285 = smul.addr %s284, 8
      %s286 = scalar_lea.vmem %s3, %s285
      // Predicated region
      $region33: #{_decoder_linear_forward.1} parent=31 // pred_check
        %p287 = pneg %p116
      $region34: #{_decoder_linear_forward.1} parent=31 // pred_check_branch
        %289 = sbr.rel (%p287) target = $region36
      $region35: #{_decoder_linear_forward.1} parent=31 // pred_region
        _
      $region36: #{_decoder_linear_forward.1} parent=31 // pred_fallthru
        _
    $region32: #{_decoder_linear_forward.1} parent=5 // pred_fallthru
      _
    %p290 = scmp.le.s32.totalorder 2, %s9
    // Predicated region
    $region37: #{_decoder_linear_forward.1} parent=5 // pred_check
      %p291 = pneg %p290
    $region38: #{_decoder_linear_forward.1} parent=5 // pred_check_branch
      %293 = sbr.rel (%p291) target = $region40
    $region39: #{_decoder_linear_forward.1} parent=5 // pred_region
      %s294 = ssub.s32 %s9, 2
      // Predicated region
      $region41: #{_decoder_linear_forward.1} parent=39 // pred_check
        %p295 = pneg %p122
      $region42: #{_decoder_linear_forward.1} parent=39 // pred_check_branch
        %297 = sbr.rel (%p295) target = $region44
      $region43: #{_decoder_linear_forward.1} parent=39 // pred_region
        %p298 = scmp.lt.s32.totalorder %s20, 1
        %s299 = scalar_select %p298, %s20, 1
        %p300 = scmp.lt.s32.totalorder %s21, 0
        %s301 = scalar_select %p300, %s21, 0
        %s302 = sadd.s32 %s301, %s299
        %s303 = smul.addr %s302, 8
        %s304 = scalar_lea.vmem %s3, %s303
      $region44: #{_decoder_linear_forward.1} parent=39 // pred_fallthru
        _
    $region40: #{_decoder_linear_forward.1} parent=5 // pred_fallthru
      _
  $region6: #{_decoder_linear_forward.1} parent=0 // loop_footer
    %s13 = sadd.s32 1, %s9
  $region7: #{_decoder_linear_forward.1} parent=0 // loop_footer_branch
    %8 = sbr.rel target = $region3
  $region8: #{_decoder_linear_forward.1} parent=0 // loop_exit
    _

</llo_original>
